<compile_context>
chip_gen: v7x
topology: tpu7x:2x2x1
jax: 0.10.0
libtpu: 0.0.40
codegen_flags: <defaults>
</compile_context>

<pallas_src>
import functools

import jax
import jax.numpy as jnp
from jax.experimental import pallas as pl
from jax.experimental.pallas import tpu as pltpu

SUBLANE = 8  # sublane granularity for the batch tile


def _round_up(n, m):
    return ((n + m - 1) // m) * m


def linearnet_kernel(x_ref, w1_ref, b1_ref, w2_ref, b2_ref, w3_ref, b3_ref, o_ref):
    mm_dtype = w1_ref.dtype
    # AbsBlock — elementwise in the input dtype (f32; v5e VPU has no bf16 path).
    h = jnp.abs(x_ref[...])
    # Linear(input_size, hidden_size): bf16 operands on the MXU, f32 accumulation,
    # bias added in f32.
    h = jnp.dot(h.astype(mm_dtype), w1_ref[...],
                preferred_element_type=jnp.float32) + b1_ref[...]
    # Linear(hidden_size, hidden_size)   (norm=False -> no LayerNorm)
    h = jnp.dot(h.astype(mm_dtype), w2_ref[...],
                preferred_element_type=jnp.float32) + b2_ref[...]
    # Linear(hidden_size, output_size)
    out = jnp.dot(h.astype(mm_dtype), w3_ref[...],
                  preferred_element_type=jnp.float32) + b3_ref[...]
    o_ref[...] = out.astype(o_ref.dtype)


def prepare_params(w1, b1, w2, b2, w3, b3, matmul_dtype=jnp.bfloat16):
    """One-time (init) parameter prep: cast weights to the MXU dtype, keep biases f32.

    w_i: [in_i, out_i] (already transposed vs torch's [out, in]); b_i: [out_i] or [1, out_i].
    No zero-padding copies are made (Mosaic handles non-128 feature dims).
    """
    def prep_b(b):
        return jnp.asarray(b, jnp.float32).reshape(1, -1)

    return dict(
        w1=jnp.asarray(w1, matmul_dtype), b1=prep_b(b1),
        w2=jnp.asarray(w2, matmul_dtype), b2=prep_b(b2),
        w3=jnp.asarray(w3, matmul_dtype), b3=prep_b(b3),
    )


def _choose_batch_tile(B, bytes_per_row, block_batch, vmem_budget_bytes):
    """Pick the batch tile TB (multiple of 8 sublanes, or the full batch if tiny)."""
    if B <= SUBLANE:
        return B  # single full-extent block
    # Cap TB so double-buffered x/out tiles (+ activation slack) fit the budget.
    cap_rows = max(SUBLANE,
                   (vmem_budget_bytes // max(bytes_per_row, 1)) // SUBLANE * SUBLANE)
    tb = min(block_batch, cap_rows, _round_up(B, SUBLANE))
    # v7x has two TensorCores: make sure the "parallel" batch axis has >= 2 grid
    # steps whenever the batch can be split, so neither core sits idle.
    if pl.cdiv(B, tb) < 2:
        tb = max(SUBLANE, _round_up(pl.cdiv(B, 2), SUBLANE))
    return tb


@functools.partial(jax.jit, static_argnames=("block_batch",))
def linearnet_forward(x, params, *, block_batch=1024):
    """x: [B, input_size] (f32); params: output of prepare_params."""
    B, in_size = x.shape
    w1, b1, w2, b2, w3, b3 = (params[k] for k in ("w1", "b1", "w2", "b2", "w3", "b3"))
    hid1 = w1.shape[1]
    hid2 = w2.shape[1]
    out_size = w3.shape[1]
    out_dtype = jnp.float32

    x_bytes = jnp.dtype(x.dtype).itemsize
    # Per-row VMEM: double-buffered x tile + double-buffered f32 out tile
    # + ~2 live f32 hidden activations.
    bytes_per_row = (2 * in_size * x_bytes + 2 * out_size * 4
                     + 2 * max(hid1, hid2) * 4)
    weight_bytes = sum(int(params[k].size) * jnp.dtype(params[k].dtype).itemsize
                       for k in ("w1", "b1", "w2", "b2", "w3", "b3"))

    # Budget sized for the smallest generation (v7x: 64 MiB VMEM per TensorCore).
    vmem_budget = (48 << 20) - weight_bytes
    TB = _choose_batch_tile(B, bytes_per_row, block_batch, vmem_budget)
    grid = (pl.cdiv(B, TB),)  # ragged last batch tile handled by the grid

    needed = TB * bytes_per_row + weight_bytes
    vmem_limit = int(min(64 << 20, max(32 << 20, 2 * needed + (4 << 20))))

    cost = pl.CostEstimate(
        flops=2 * B * (in_size * hid1 + hid1 * hid2 + hid2 * out_size),
        transcendentals=0,
        bytes_accessed=(B * in_size * x_bytes + B * out_size * 4 + weight_bytes),
    )

    def const_spec(shape):
        # Weights/biases: block index never changes -> single-buffered, resident.
        return pl.BlockSpec(shape, lambda i: (0, 0), pipeline_mode=pl.Buffered(1))

    return pl.pallas_call(
        linearnet_kernel,
        out_shape=jax.ShapeDtypeStruct((B, out_size), out_dtype),
        grid=grid,
        in_specs=[
            pl.BlockSpec((TB, in_size), lambda i: (i, 0)),  # x: pipelined over batch
            const_spec((in_size, hid1)),
            const_spec((1, hid1)),
            const_spec((hid1, hid2)),
            const_spec((1, hid2)),
            const_spec((hid2, out_size)),
            const_spec((1, out_size)),
        ],
        out_specs=pl.BlockSpec((TB, out_size), lambda i: (i, 0)),
        compiler_params=pltpu.CompilerParams(
            dimension_semantics=("parallel",),
            vmem_limit_bytes=vmem_limit,
        ),
        cost_estimate=cost,
    )(x, w1, b1, w2, b2, w3, b3)


def init_linear(key, in_features, out_features, dtype=jnp.float32):
    """Mimic torch.nn.Linear default init: U(-1/sqrt(in), 1/sqrt(in)).
    Returns W as [in, out] (already transposed for the kernel) and b as [1, out]."""
    kw, kb = jax.random.split(key)
    bound = 1.0 / jnp.sqrt(jnp.asarray(in_features, dtype))
    w = jax.random.uniform(kw, (in_features, out_features), dtype, -bound, bound)
    b = jax.random.uniform(kb, (1, out_features), dtype, -bound, bound)
    return w, b


if __name__ == "__main__":
    # LinearNet(input_size=32, num_layers=3, hidden_size=32, output_size=16,
    #           norm=False, Phi_sign=False)
    batch = 8
    input_size = 32
    hidden_size = 32
    output_size = 16

    key = jax.random.PRNGKey(0)
    kx, k1, k2, k3 = jax.random.split(key, 4)

    x = jax.random.normal(kx, (batch, input_size), jnp.float32)
    w1, b1 = init_linear(k1, input_size, hidden_size)
    w2, b2 = init_linear(k2, hidden_size, hidden_size)
    w3, b3 = init_linear(k3, hidden_size, output_size)

    # One-time parameter prep: bf16 matmul operands, f32 biases, no padded copies.
    params = prepare_params(w1, b1, w2, b2, w3, b3, matmul_dtype=jnp.bfloat16)

    out = linearnet_forward(x, params)
    out = jax.block_until_ready(out)
    assert out.shape == (batch, output_size)

    # Reference 1: same mixed precision as the kernel (bf16 operands, f32 accum).
    def ref_mixed(xv):
        h = jnp.abs(xv)
        h = jnp.dot(h.astype(jnp.bfloat16), w1.astype(jnp.bfloat16),
                    preferred_element_type=jnp.float32) + b1
        h = jnp.dot(h.astype(jnp.bfloat16), w2.astype(jnp.bfloat16),
                    preferred_element_type=jnp.float32) + b2
        return jnp.dot(h.astype(jnp.bfloat16), w3.astype(jnp.bfloat16),
                       preferred_element_type=jnp.float32) + b3

    assert jnp.allclose(out, ref_mixed(x), atol=1e-3, rtol=1e-3)

    # Reference 2: full-f32 PyTorch semantics (bf16 matmul operands contribute
    # only ~1e-3 absolute error at these scales).
    ref = jnp.abs(x) @ w1 + b1
    ref = ref @ w2 + b2
    ref = ref @ w3 + b3
    assert jnp.allclose(out, ref, atol=5e-2, rtol=5e-2)

    print("KERNEL_OK")
</pallas_src>

<mosaic_0001>
module attributes {stable_mosaic.version = 11 : i64} {
  func.func @linearnet_kernel(%arg0: i32, %arg1: memref<8x32xf32, #tpu.memory_space<vmem>>, %arg2: memref<32x32xbf16, #tpu.memory_space<vmem>>, %arg3: memref<1x32xf32, #tpu.memory_space<vmem>>, %arg4: memref<32x32xbf16, #tpu.memory_space<vmem>>, %arg5: memref<1x32xf32, #tpu.memory_space<vmem>>, %arg6: memref<32x16xbf16, #tpu.memory_space<vmem>>, %arg7: memref<1x16xf32, #tpu.memory_space<vmem>>, %arg8: memref<8x16xf32, #tpu.memory_space<vmem>>) attributes {dimension_semantics = [#tpu.dimension_semantics<parallel>], iteration_bounds = array<i64: 1>, scalar_prefetch = 0 : i64, scratch_operands = 0 : i64, tpu.core_type = #tpu.core_type<tc>, window_params = [{transform_indices = @transform_0, window_bounds = array<i64: 8, 32>}, {pipeline_mode = #tpu.pipeline_mode<synchronous>, transform_indices = @transform_1, window_bounds = array<i64: 32, 32>}, {pipeline_mode = #tpu.pipeline_mode<synchronous>, transform_indices = @transform_2, window_bounds = array<i64: 1, 32>}, {pipeline_mode = #tpu.pipeline_mode<synchronous>, transform_indices = @transform_3, window_bounds = array<i64: 32, 32>}, {pipeline_mode = #tpu.pipeline_mode<synchronous>, transform_indices = @transform_4, window_bounds = array<i64: 1, 32>}, {pipeline_mode = #tpu.pipeline_mode<synchronous>, transform_indices = @transform_5, window_bounds = array<i64: 32, 16>}, {pipeline_mode = #tpu.pipeline_mode<synchronous>, transform_indices = @transform_6, window_bounds = array<i64: 1, 16>}, {transform_indices = @transform_7, window_bounds = array<i64: 8, 16>}]} {
    %c0 = arith.constant 0 : index
    %c0_0 = arith.constant 0 : index
    %0 = vector.load %arg1[%c0, %c0_0] : memref<8x32xf32, #tpu.memory_space<vmem>>, vector<8x32xf32>
    %1 = math.absf %0 : vector<8x32xf32>
    %2 = arith.truncf %1 : vector<8x32xf32> to vector<8x32xbf16>
    %c0_1 = arith.constant 0 : index
    %c0_2 = arith.constant 0 : index
    %3 = vector.load %arg2[%c0_1, %c0_2] : memref<32x32xbf16, #tpu.memory_space<vmem>>, vector<32x32xbf16>
    %cst = arith.constant dense<0.000000e+00> : vector<8x32xf32>
    %4 = tpu.matmul %2, %3, %cst {dimension_numbers = #tpu.dot_dimension_numbers<[1], [0], [0], [1], [0, 0, 1, 1], [], []>} : vector<8x32xbf16>, vector<32x32xbf16>, vector<8x32xf32> -> vector<8x32xf32>
    %c0_3 = arith.constant 0 : index
    %c0_4 = arith.constant 0 : index
    %5 = vector.load %arg3[%c0_3, %c0_4] : memref<1x32xf32, #tpu.memory_space<vmem>>, vector<1x32xf32>
    %6 = vector.broadcast %5 : vector<1x32xf32> to vector<8x32xf32>
    %7 = arith.addf %4, %6 : vector<8x32xf32>
    %8 = arith.truncf %7 : vector<8x32xf32> to vector<8x32xbf16>
    %c0_5 = arith.constant 0 : index
    %c0_6 = arith.constant 0 : index
    %9 = vector.load %arg4[%c0_5, %c0_6] : memref<32x32xbf16, #tpu.memory_space<vmem>>, vector<32x32xbf16>
    %cst_7 = arith.constant dense<0.000000e+00> : vector<8x32xf32>
    %10 = tpu.matmul %8, %9, %cst_7 {dimension_numbers = #tpu.dot_dimension_numbers<[1], [0], [0], [1], [0, 0, 1, 1], [], []>} : vector<8x32xbf16>, vector<32x32xbf16>, vector<8x32xf32> -> vector<8x32xf32>
    %c0_8 = arith.constant 0 : index
    %c0_9 = arith.constant 0 : index
    %11 = vector.load %arg5[%c0_8, %c0_9] : memref<1x32xf32, #tpu.memory_space<vmem>>, vector<1x32xf32>
    %12 = vector.broadcast %11 : vector<1x32xf32> to vector<8x32xf32>
    %13 = arith.addf %10, %12 : vector<8x32xf32>
    %14 = arith.truncf %13 : vector<8x32xf32> to vector<8x32xbf16>
    %c0_10 = arith.constant 0 : index
    %c0_11 = arith.constant 0 : index
    %15 = vector.load %arg6[%c0_10, %c0_11] : memref<32x16xbf16, #tpu.memory_space<vmem>>, vector<32x16xbf16>
    %cst_12 = arith.constant dense<0.000000e+00> : vector<8x16xf32>
    %16 = tpu.matmul %14, %15, %cst_12 {dimension_numbers = #tpu.dot_dimension_numbers<[1], [0], [0], [1], [0, 0, 1, 1], [], []>} : vector<8x32xbf16>, vector<32x16xbf16>, vector<8x16xf32> -> vector<8x16xf32>
    %c0_13 = arith.constant 0 : index
    %c0_14 = arith.constant 0 : index
    %17 = vector.load %arg7[%c0_13, %c0_14] : memref<1x16xf32, #tpu.memory_space<vmem>>, vector<1x16xf32>
    %18 = vector.broadcast %17 : vector<1x16xf32> to vector<8x16xf32>
    %19 = arith.addf %16, %18 : vector<8x16xf32>
    %c0_15 = arith.constant 0 : index
    %c0_16 = arith.constant 0 : index
    %20 = vector.load %arg8[%c0_15, %c0_16] : memref<8x16xf32, #tpu.memory_space<vmem>>, vector<8x16xf32>
    tpu.vector_store %arg8[%c0_15, %c0_16], %19 {strides = array<i32>} : memref<8x16xf32, #tpu.memory_space<vmem>>, vector<8x16xf32>,
    return
  }
  func.func @transform_0(%arg0: i32) -> (i32, i32) {
    %c0_i32 = arith.constant 0 : i32
    %c0_i32_0 = arith.constant 0 : i32
    return %arg0, %c0_i32 : i32, i32
  }
  func.func @transform_1(%arg0: i32) -> (i32, i32) {
    %c0_i32 = arith.constant 0 : i32
    %c0_i32_0 = arith.constant 0 : i32
    %c0_i32_1 = arith.constant 0 : i32
    return %c0_i32, %c0_i32_0 : i32, i32
  }
  func.func @transform_2(%arg0: i32) -> (i32, i32) {
    %c0_i32 = arith.constant 0 : i32
    %c0_i32_0 = arith.constant 0 : i32
    %c0_i32_1 = arith.constant 0 : i32
    return %c0_i32, %c0_i32_0 : i32, i32
  }
  func.func @transform_3(%arg0: i32) -> (i32, i32) {
    %c0_i32 = arith.constant 0 : i32
    %c0_i32_0 = arith.constant 0 : i32
    %c0_i32_1 = arith.constant 0 : i32
    return %c0_i32, %c0_i32_0 : i32, i32
  }
  func.func @transform_4(%arg0: i32) -> (i32, i32) {
    %c0_i32 = arith.constant 0 : i32
    %c0_i32_0 = arith.constant 0 : i32
    %c0_i32_1 = arith.constant 0 : i32
    return %c0_i32, %c0_i32_0 : i32, i32
  }
  func.func @transform_5(%arg0: i32) -> (i32, i32) {
    %c0_i32 = arith.constant 0 : i32
    %c0_i32_0 = arith.constant 0 : i32
    %c0_i32_1 = arith.constant 0 : i32
    return %c0_i32, %c0_i32_0 : i32, i32
  }
  func.func @transform_6(%arg0: i32) -> (i32, i32) {
    %c0_i32 = arith.constant 0 : i32
    %c0_i32_0 = arith.constant 0 : i32
    %c0_i32_1 = arith.constant 0 : i32
    return %c0_i32, %c0_i32_0 : i32, i32
  }
  func.func @transform_7(%arg0: i32) -> (i32, i32) {
    %c0_i32 = arith.constant 0 : i32
    %c0_i32_0 = arith.constant 0 : i32
    return %arg0, %c0_i32 : i32, i32
  }
}

</mosaic_0001>

<llo_original>
// kernel: linearnet_forward.1
$region0: #{linearnet_forward.1}
  #allocation0 [shape = 'u32[]', space=smem, size = 0x4, offset = 0x4, fixed_abs, tag = 'smem constant byte address 0x4 - core index']
  #allocation1 [shape = 'u32[144,128]{1,0:T(1,128)}', space=vmem, size = 0x12000, scoped, tag = 'internal scratch']
  %s0 = inlined_call_operand.hbm [shape: f32[8,32], index: 0, kind: input, shape index: {}]
  %s1 = inlined_call_operand.vmem [shape: bf16[32,32], index: 1, kind: input, shape index: {}]
  %s2 = inlined_call_operand.vmem [shape: f32[1,32], index: 2, kind: input, shape index: {}]
  %s3 = inlined_call_operand.vmem [shape: bf16[32,32], index: 3, kind: input, shape index: {}]
  %s4 = inlined_call_operand.vmem [shape: f32[1,32], index: 4, kind: input, shape index: {}]
  %s5 = inlined_call_operand.vmem [shape: bf16[32,16], index: 5, kind: input, shape index: {}]
  %s6 = inlined_call_operand.hbm [shape: f32[1,16], index: 6, kind: input, shape index: {}]
  %s7 = inlined_call_operand.hbm [shape: f32[8,16], index: 7, kind: output, shape index: {}]
  %s8 = sld [smem:[#allocation0]]
  $region46: #{linearnet_forward.1} parent=0
    _
  %s10 = ssub.s32 1, %s8
  %s11 = scalar_select 0, %s10, %s8
  $region1: #{linearnet_forward.1} parent=0
    #allocation2 [shape = 'u8[4096]{0}', space=vmem, size = 0x1000, scoped, tag = 'input window, operand 0, single buffered']
    #allocation3 [shape = 's32[1]{0}', space=sflag, size = 0x4, scoped, tag = 'scoped memory for linearnet_forward.1']
    #allocation4 [shape = 's32[1]{0}', space=sflag, size = 0x4, scoped, tag = 'scoped memory for linearnet_forward.1']
    #allocation5 [shape = 'u8[512]{0}', space=vmem, size = 0x400, scoped, tag = 'input window, operand 6, single buffered']
    #allocation6 [shape = 's32[1]{0}', space=sflag, size = 0x4, scoped, tag = 'scoped memory for linearnet_forward.1']
    #allocation7 [shape = 'u8[4096]{0}', space=vmem, size = 0x1000, scoped, tag = 'output window, operand 0, single buffered']
    %12 = vsyncpa [#allocation3], 0
    %13 = vsyncpa [#allocation6], 0
    %14 = vsyncpa [#allocation4], 0
    // Predicated region
    $region2: #{linearnet_forward.1} parent=1 // pred_check
      _
    $region3: #{linearnet_forward.1} parent=1 // pred_check_branch
      %16 = sbr.rel (0) target = $region5
    $region4: #{linearnet_forward.1} parent=1 // pred_region
      %s18 = ssub.s32 128, 128
      %19 = vsyncadd [#allocation3], %s18
      %s21 = sshll.u32 [#allocation2], 4
      %s22 = int_to_ptr.vmem [resolvable:$true] %s21
      %24 = dma.hbm_to_vmem [thread:$0]  %s0, 128, %s22, [#allocation3]
    $region5: #{linearnet_forward.1} parent=1 // pred_fallthru
      _
    // Predicated region
    $region6: #{linearnet_forward.1} parent=1 // pred_check
      _
    $region7: #{linearnet_forward.1} parent=1 // pred_check_branch
      %26 = sbr.rel (0) target = $region9
    $region8: #{linearnet_forward.1} parent=1 // pred_region
      _
    $region9: #{linearnet_forward.1} parent=1 // pred_fallthru
      _
    // Predicated region
    $region10: #{linearnet_forward.1} parent=1 // pred_check
      _
    $region11: #{linearnet_forward.1} parent=1 // pred_check_branch
      %28 = sbr.rel (0) target = $region13
    $region12: #{linearnet_forward.1} parent=1 // pred_region
      _
    $region13: #{linearnet_forward.1} parent=1 // pred_fallthru
      _
    // Predicated region
    $region14: #{linearnet_forward.1} parent=1 // pred_check
      _
    $region15: #{linearnet_forward.1} parent=1 // pred_check_branch
      %30 = sbr.rel (0) target = $region17
    $region16: #{linearnet_forward.1} parent=1 // pred_region
      _
    $region17: #{linearnet_forward.1} parent=1 // pred_fallthru
      _
    // Predicated region
    $region18: #{linearnet_forward.1} parent=1 // pred_check
      _
    $region19: #{linearnet_forward.1} parent=1 // pred_check_branch
      %32 = sbr.rel (0) target = $region21
    $region20: #{linearnet_forward.1} parent=1 // pred_region
      _
    $region21: #{linearnet_forward.1} parent=1 // pred_fallthru
      _
    // Predicated region
    $region22: #{linearnet_forward.1} parent=1 // pred_check
      _
    $region23: #{linearnet_forward.1} parent=1 // pred_check_branch
      %34 = sbr.rel (0) target = $region25
    $region24: #{linearnet_forward.1} parent=1 // pred_region
      _
    $region25: #{linearnet_forward.1} parent=1 // pred_fallthru
      _
    // Predicated region
    $region26: #{linearnet_forward.1} parent=1 // pred_check
      _
    $region27: #{linearnet_forward.1} parent=1 // pred_check_branch
      %36 = sbr.rel (0) target = $region29
    $region28: #{linearnet_forward.1} parent=1 // pred_region
      %s38 = ssub.s32 16, 16
      %39 = vsyncadd [#allocation6], %s38
      %s41 = sshll.u32 [#allocation5], 4
      %s42 = int_to_ptr.vmem [resolvable:$true] %s41
      %44 = dma.hbm_to_vmem [thread:$0]  %s6, 16, %s42, [#allocation6]
    $region29: #{linearnet_forward.1} parent=1 // pred_fallthru
      _
    // Predicated region
    $region30: #{linearnet_forward.1} parent=1 // pred_check
      _
    $region31: #{linearnet_forward.1} parent=1 // pred_check_branch
      %46 = sbr.rel (0) target = $region33
    $region32: #{linearnet_forward.1} parent=1 // pred_region
      %47 = dma.done [#allocation3], 128
    $region33: #{linearnet_forward.1} parent=1 // pred_fallthru
      _
    // Predicated region
    $region34: #{linearnet_forward.1} parent=1 // pred_check
      _
    $region35: #{linearnet_forward.1} parent=1 // pred_check_branch
      %49 = sbr.rel (0) target = $region37
    $region36: #{linearnet_forward.1} parent=1 // pred_region
      %50 = dma.done [#allocation6], 16
    $region37: #{linearnet_forward.1} parent=1 // pred_fallthru
      _
    %v52 = vld [vmem:[#allocation2] sm:$0xff]
    %v53 = vand.u32 2147483647, %v52
    %v54 = vpack.c.bf16 %v53, %v53
    %v55 = vld [vmem:[%s1] sm:$0xf]
    %v56 = vld [vmem:[%s1 + $0x4] sm:$0xf]
    %v57 = vld [vmem:[%s1 + $0x8] sm:$0xf]
    %v58 = vld [vmem:[%s1 + $0xc] sm:$0xf]
    %v59 = vld [vmem:[%s2] sm:$0x1]
    %v61 = vlaneseq
    %v62 = vshrl.u32 %v61, 7
    %v63 = vsub.s32 0, %v62
    %v64 = vrot.slane %v59, %v63
    %v70 = vunpack.c.l.b16 %v55
    %v71 = vunpack.c.l.b16 %v56
    %v72 = vunpack.c.l.b16 %v57
    %v73 = vunpack.c.l.b16 %v58
    %v74 = vpack.c.b16 %v71, %v70
    %v75 = vpack.c.b16 %v73, %v72
    %vm78 = vcmask 261120
    %v80 = vsel %vm78, %v54, 0
    %82 = vmatprep.subr.bf16.mxu0 0
    %83 = vmatpush1.bf16.msra.mxu0 %v74
    %84 = vmatprep.subr.bf16.mxu0 0
    %85 = vmatpush1.bf16.msra.mxu0 %v75
    %86 = vmatprep.subr.bf16.mxu0 0
    %87 = vmatpush1.bf16.msra.mxu0 0
    %88 = vmatprep.subr.bf16.mxu0 0
    %89 = vmatpush1.bf16.msra.mxu0 0
    %90 = vmatprep.subr.bf16.mxu0 0
    %91 = vmatpush1.bf16.msra.mxu0 0
    %92 = vmatprep.subr.bf16.mxu0 0
    %93 = vmatpush1.bf16.msra.mxu0 0
    %94 = vmatprep.subr.bf16.mxu0 0
    %95 = vmatpush1.bf16.msra.mxu0 0
    %96 = vmatprep.subr.bf16.mxu0 0
    %97 = vmatpush1.bf16.msra.mxu0 0
    %98 = vmatprep.subr.bf16.mxu0 0
    %99 = vmatpush1.bf16.msra.mxu0 0
    %100 = vmatprep.subr.bf16.mxu0 0
    %101 = vmatpush1.bf16.msra.mxu0 0
    %102 = vmatprep.subr.bf16.mxu0 0
    %103 = vmatpush1.bf16.msra.mxu0 0
    %104 = vmatprep.subr.bf16.mxu0 0
    %105 = vmatpush1.bf16.msra.mxu0 0
    %106 = vmatprep.subr.bf16.mxu0 0
    %107 = vmatpush1.bf16.msra.mxu0 0
    %108 = vmatprep.subr.bf16.mxu0 0
    %109 = vmatpush1.bf16.msra.mxu0 0
    %110 = vmatprep.subr.bf16.mxu0 0
    %111 = vmatpush1.bf16.msra.mxu0 0
    %112 = vmatprep.subr.bf16.mxu0 0
    %113 = vmatpush1.bf16.msra.mxu0 0
    %114 = vmatprep.mubr.bf16.mxu0 0
    %115 = vmatmul.mubr.bf16.gmra.mrb[0].mxu0 %v80
    %v116 = vpop.f32.mrb[0].mxu0
    %v117 = vadd.f32 %v64, %v116
    %v118 = vpop.f32.mrb[0].mxu0
    %v119 = vpop.f32.mrb[0].mxu0
    %v120 = vpop.f32.mrb[0].mxu0
    %121 = vdwg.mxu0
    %v122 = vpack.c.bf16 %v117, %v117
    %v123 = vld [vmem:[%s3] sm:$0xf]
    %v124 = vld [vmem:[%s3 + $0x4] sm:$0xf]
    %v125 = vld [vmem:[%s3 + $0x8] sm:$0xf]
    %v126 = vld [vmem:[%s3 + $0xc] sm:$0xf]
    %v127 = vld [vmem:[%s4] sm:$0x1]
    %v129 = vlaneseq
    %v130 = vshrl.u32 %v129, 7
    %v131 = vsub.s32 0, %v130
    %v132 = vrot.slane %v127, %v131
    %v138 = vunpack.c.l.b16 %v123
    %v139 = vunpack.c.l.b16 %v124
    %v140 = vunpack.c.l.b16 %v125
    %v141 = vunpack.c.l.b16 %v126
    %v142 = vpack.c.b16 %v139, %v138
    %v143 = vpack.c.b16 %v141, %v140
    %v147 = vsel %vm78, %v122, 0
    %149 = vmatprep.subr.bf16.mxu0 0
    %150 = vmatpush1.bf16.msra.mxu0 %v142
    %151 = vmatprep.subr.bf16.mxu0 0
    %152 = vmatpush1.bf16.msra.mxu0 %v143
    %153 = vmatprep.subr.bf16.mxu0 0
    %154 = vmatpush1.bf16.msra.mxu0 0
    %155 = vmatprep.subr.bf16.mxu0 0
    %156 = vmatpush1.bf16.msra.mxu0 0
    %157 = vmatprep.subr.bf16.mxu0 0
    %158 = vmatpush1.bf16.msra.mxu0 0
    %159 = vmatprep.subr.bf16.mxu0 0
    %160 = vmatpush1.bf16.msra.mxu0 0
    %161 = vmatprep.subr.bf16.mxu0 0
    %162 = vmatpush1.bf16.msra.mxu0 0
    %163 = vmatprep.subr.bf16.mxu0 0
    %164 = vmatpush1.bf16.msra.mxu0 0
    %165 = vmatprep.subr.bf16.mxu0 0
    %166 = vmatpush1.bf16.msra.mxu0 0
    %167 = vmatprep.subr.bf16.mxu0 0
    %168 = vmatpush1.bf16.msra.mxu0 0
    %169 = vmatprep.subr.bf16.mxu0 0
    %170 = vmatpush1.bf16.msra.mxu0 0
    %171 = vmatprep.subr.bf16.mxu0 0
    %172 = vmatpush1.bf16.msra.mxu0 0
    %173 = vmatprep.subr.bf16.mxu0 0
    %174 = vmatpush1.bf16.msra.mxu0 0
    %175 = vmatprep.subr.bf16.mxu0 0
    %176 = vmatpush1.bf16.msra.mxu0 0
    %177 = vmatprep.subr.bf16.mxu0 0
    %178 = vmatpush1.bf16.msra.mxu0 0
    %179 = vmatprep.subr.bf16.mxu0 0
    %180 = vmatpush1.bf16.msra.mxu0 0
    %181 = vmatprep.mubr.bf16.mxu0 0
    %182 = vmatmul.mubr.bf16.gmra.mrb[0].mxu0 %v147
    %v183 = vpop.f32.mrb[0].mxu0
    %v184 = vadd.f32 %v132, %v183
    %v185 = vpop.f32.mrb[0].mxu0
    %v186 = vpop.f32.mrb[0].mxu0
    %v187 = vpop.f32.mrb[0].mxu0
    %188 = vdwg.mxu0
    %v189 = vpack.c.bf16 %v184, %v184
    %v190 = vld [vmem:[%s5] sm:$0xf]
    %v191 = vld [vmem:[%s5 + $0x4] sm:$0xf]
    %v192 = vld [vmem:[%s5 + $0x8] sm:$0xf]
    %v193 = vld [vmem:[%s5 + $0xc] sm:$0xf]
    %v194 = vld [vmem:[#allocation5] sm:$0x1]
    %v196 = vlaneseq
    %v197 = vshrl.u32 %v196, 7
    %v198 = vsub.s32 0, %v197
    %v199 = vrot.slane %v194, %v198
    %v205 = vunpack.c.l.b16 %v190
    %v206 = vunpack.c.l.b16 %v191
    %v207 = vunpack.c.l.b16 %v192
    %v208 = vunpack.c.l.b16 %v193
    %v209 = vpack.c.b16 %v206, %v205
    %v210 = vpack.c.b16 %v208, %v207
    %v214 = vsel %vm78, %v189, 0
    %216 = vmatprep.subr.bf16.mxu0 0
    %217 = vmatpush1.bf16.msra.mxu0 %v209
    %218 = vmatprep.subr.bf16.mxu0 0
    %219 = vmatpush1.bf16.msra.mxu0 %v210
    %220 = vmatprep.subr.bf16.mxu0 0
    %221 = vmatpush1.bf16.msra.mxu0 0
    %222 = vmatprep.subr.bf16.mxu0 0
    %223 = vmatpush1.bf16.msra.mxu0 0
    %224 = vmatprep.subr.bf16.mxu0 0
    %225 = vmatpush1.bf16.msra.mxu0 0
    %226 = vmatprep.subr.bf16.mxu0 0
    %227 = vmatpush1.bf16.msra.mxu0 0
    %228 = vmatprep.subr.bf16.mxu0 0
    %229 = vmatpush1.bf16.msra.mxu0 0
    %230 = vmatprep.subr.bf16.mxu0 0
    %231 = vmatpush1.bf16.msra.mxu0 0
    %232 = vmatprep.subr.bf16.mxu0 0
    %233 = vmatpush1.bf16.msra.mxu0 0
    %234 = vmatprep.subr.bf16.mxu0 0
    %235 = vmatpush1.bf16.msra.mxu0 0
    %236 = vmatprep.subr.bf16.mxu0 0
    %237 = vmatpush1.bf16.msra.mxu0 0
    %238 = vmatprep.subr.bf16.mxu0 0
    %239 = vmatpush1.bf16.msra.mxu0 0
    %240 = vmatprep.subr.bf16.mxu0 0
    %241 = vmatpush1.bf16.msra.mxu0 0
    %242 = vmatprep.subr.bf16.mxu0 0
    %243 = vmatpush1.bf16.msra.mxu0 0
    %244 = vmatprep.subr.bf16.mxu0 0
    %245 = vmatpush1.bf16.msra.mxu0 0
    %246 = vmatprep.subr.bf16.mxu0 0
    %247 = vmatpush1.bf16.msra.mxu0 0
    %248 = vmatprep.mubr.bf16.mxu0 0
    %249 = vmatmul.mubr.bf16.gmra.mrb[0].mxu0 %v214
    %v250 = vpop.f32.mrb[0].mxu0
    %v251 = vadd.f32 %v199, %v250
    %v252 = vpop.f32.mrb[0].mxu0
    %v253 = vpop.f32.mrb[0].mxu0
    %v254 = vpop.f32.mrb[0].mxu0
    %255 = vdwg.mxu0
    %vm256 = vcmask 130048
    %257 = vst.msk [vmem:[#allocation7] sm:$0xff] %vm256, %v251
    // Predicated region
    $region38: #{linearnet_forward.1} parent=1 // pred_check
      _
    $region39: #{linearnet_forward.1} parent=1 // pred_check_branch
      %259 = sbr.rel (0) target = $region41
    $region40: #{linearnet_forward.1} parent=1 // pred_region
      %s261 = ssub.s32 128, 128
      %262 = vsyncadd [#allocation4], %s261
      %s264 = sshll.u32 [#allocation7], 4
      %s265 = int_to_ptr.vmem [resolvable:$true] %s264
      %267 = dma.vmem_to_hbm [thread:$0]  %s265, 128, %s7, [#allocation4]
    $region41: #{linearnet_forward.1} parent=1 // pred_fallthru
      _
    // Predicated region
    $region42: #{linearnet_forward.1} parent=1 // pred_check
      _
    $region43: #{linearnet_forward.1} parent=1 // pred_check_branch
      %269 = sbr.rel (0) target = $region45
    $region44: #{linearnet_forward.1} parent=1 // pred_region
      %270 = dma.done [#allocation4], 128
    $region45: #{linearnet_forward.1} parent=1 // pred_fallthru
      _
    %271 = vsyncpa [#allocation3], 1
    %272 = vsyncpa [#allocation6], 1
    %273 = vsyncpa [#allocation4], 1

</llo_original>
